<compile_context>
chip_gen: v6e
topology: v6e:2x2x1
jax: 0.10.0
libtpu: 0.0.40
codegen_flags: <defaults>
</compile_context>

<pallas_src>
import math

import jax
import jax.numpy as jnp
from jax.experimental import pallas as pl
from jax.experimental.pallas import tpu as pltpu


def _cdiv(a, b):
    return -(-a // b)


def _mask_mul_kernel(mask_ref, x_ref, o_ref):
    # (tb, L) * (1, L) broadcast multiply; mask is f32, cast only on store.
    o_ref[...] = (x_ref[...] * mask_ref[...]).astype(o_ref.dtype)


def _vmem_budget_bytes():
    """Scoped-VMEM budget for this kernel, derived from the chip we run on."""
    phys = None
    try:
        phys = getattr(pltpu.get_tpu_info(), "vmem_capacity_bytes", None)
    except Exception:
        phys = None
    if not phys:
        phys = 64 * 1024 * 1024          # assume the smallest (v7x per-TC VMEM)
    # <= 3/4 of physical, capped at 64 MiB: 64 MiB on v5e/v6e (128 MiB phys),
    # 48 MiB on v7x (64 MiB phys).
    return min(3 * phys // 4, 64 * 1024 * 1024)


def _pallas_broadcast_mul(xf, maskf, *, in_place=False):
    """xf: (rows, cols); maskf: (1, cols) float32. Returns xf * maskf."""
    rows, cols = xf.shape
    itemsize = jnp.dtype(xf.dtype).itemsize
    # dtype-native sublane multiple: 8 for f32, 16 for bf16, 32 for int8/fp8.
    sublane = max(8, 32 // itemsize)

    vmem_limit = _vmem_budget_bytes()
    # x-in and out tiles are each double-buffered (4 tile-sized VMEM buffers);
    # /5 leaves headroom for the resident (1, cols) mask + compiler scratch.
    tile_bytes = vmem_limit // 5
    row_bytes = max(1, cols * itemsize)
    tb_cap = max(sublane, (tile_bytes // row_bytes) // sublane * sublane)

    if rows <= tb_cap:
        tb = rows                               # single full-extent block
    else:
        tb = tb_cap
        # Keep >= 4 grid steps so the DMA pipeline actually overlaps and both
        # v7x TensorCores get work under dimension_semantics=("parallel",).
        if _cdiv(rows, tb) < 4:
            tb = max(sublane, _cdiv(_cdiv(rows, 4), sublane) * sublane)
    num_steps = _cdiv(rows, tb)                 # ragged tail handled by Pallas

    out = pl.pallas_call(
        _mask_mul_kernel,
        out_shape=jax.ShapeDtypeStruct((rows, cols), xf.dtype),
        grid=(num_steps,),
        in_specs=[
            pl.BlockSpec((1, cols), lambda i: (0, 0)),    # mask: resident
            pl.BlockSpec((tb, cols), lambda i: (i, 0)),   # x: streamed by tile
        ],
        out_specs=pl.BlockSpec((tb, cols), lambda i: (i, 0)),
        # Reuse x's HBM buffer for the output only when the caller says x is
        # dead afterwards (e.g. inside jit with a donated/temporary x).
        input_output_aliases=({1: 0} if in_place else {}),
        compiler_params=pltpu.CompilerParams(
            dimension_semantics=("parallel",),            # shard tiles on v7x
            vmem_limit_bytes=vmem_limit,
        ),
    )(maskf, xf)
    return out


def variational_dropout(x, p, mode, key=None, *, in_place=False):
    """x: (B, F) activations; p: (F,) retain-probability parameter."""
    B, F = x.shape

    # Mask built once per forward in float32 (matches torch.clamp/bernoulli on
    # self.p); only the final product is cast back to x.dtype in the kernel.
    keep = jnp.clip(p.astype(jnp.float32), 0.0, 1.0)
    if mode == "deterministic":
        mask = keep
    elif mode == "stochastic":
        if key is None:
            raise ValueError("stochastic mode requires a PRNG key")
        mask = jax.random.bernoulli(key, keep).astype(jnp.float32)
    else:
        raise Exception("Check mode: stochastic or deterministic only")

    # Lane-density: fold batch rows into the lane axis so the last dim is a
    # multiple of 128 (full-width vst, no masked partial stores).  The fold is
    # guaranteed: if B is not divisible by the fold factor, pad < fold rows.
    fold = 1
    if F % 128 != 0:
        fold = 128 // math.gcd(F, 128)
    B_pad = _cdiv(B, fold) * fold
    xr = x if B_pad == B else jnp.pad(x, ((0, B_pad - B), (0, 0)))
    xf = xr.reshape(B_pad // fold, F * fold)
    maskf = jnp.tile(mask, (fold,)).reshape(1, F * fold)

    out = _pallas_broadcast_mul(xf, maskf, in_place=in_place)
    out = out.reshape(B_pad, F)
    return out[:B] if B_pad != B else out


if __name__ == "__main__":
    B, F = 8, 32  # batch=8, hidden/features=32 (layer masks dim 1 of a 2-D input)

    key = jax.random.PRNGKey(0)
    kx, kp, km = jax.random.split(key, 3)
    x = jax.random.normal(kx, (B, F), dtype=jnp.float32)
    # initial_rates parameter: values around [0, 1] (some slightly outside to
    # exercise the clamp), deterministic from PRNGKey(0).
    p = jax.random.uniform(kp, (F,), dtype=jnp.float32, minval=-0.2, maxval=1.2)

    # --- deterministic mode: check against pure-JAX reference ---
    out_det = variational_dropout(x, p, mode="deterministic")
    jax.block_until_ready(out_det)
    ref_det = x * jnp.clip(p, 0.0, 1.0).reshape(1, F)
    assert jnp.allclose(out_det, ref_det, atol=1e-6), "deterministic mismatch"

    # --- stochastic mode: Bernoulli mask drawn once, broadcast over rows ---
    out_sto = variational_dropout(x, p, mode="stochastic", key=km)
    jax.block_until_ready(out_sto)
    mask_ref = jax.random.bernoulli(km, jnp.clip(p, 0.0, 1.0)).astype(jnp.float32)
    ref_sto = x * mask_ref.reshape(1, F)
    assert jnp.allclose(out_sto, ref_sto, atol=1e-6), "stochastic mismatch"
    # every output element must be either 0 or equal to the input (mask in {0,1})
    ok = jnp.all((out_sto == 0.0) | jnp.isclose(out_sto, x))
    assert bool(ok), "stochastic mask not {0,1}"

    print("KERNEL_OK")
</pallas_src>

<mosaic_0001>
module attributes {stable_mosaic.version = 11 : i64} {
  func.func @_mask_mul_kernel(%arg0: i32, %arg1: memref<1x128xf32, #tpu.memory_space<vmem>>, %arg2: memref<2x128xf32, #tpu.memory_space<vmem>>, %arg3: memref<2x128xf32, #tpu.memory_space<vmem>>) attributes {dimension_semantics = [#tpu.dimension_semantics<parallel>], iteration_bounds = array<i64: 1>, scalar_prefetch = 0 : i64, scratch_operands = 0 : i64, tpu.core_type = #tpu.core_type<tc>, window_params = [{pipeline_mode = #tpu.pipeline_mode<synchronous>, transform_indices = @transform_0, window_bounds = array<i64: 1, 128>}, {transform_indices = @transform_1, window_bounds = array<i64: 2, 128>}, {transform_indices = @transform_2, window_bounds = array<i64: 2, 128>}]} {
    %c0 = arith.constant 0 : index
    %c0_0 = arith.constant 0 : index
    %0 = vector.load %arg2[%c0, %c0_0] : memref<2x128xf32, #tpu.memory_space<vmem>>, vector<2x128xf32>
    %c0_1 = arith.constant 0 : index
    %c0_2 = arith.constant 0 : index
    %1 = vector.load %arg1[%c0_1, %c0_2] : memref<1x128xf32, #tpu.memory_space<vmem>>, vector<1x128xf32>
    %2 = vector.broadcast %1 : vector<1x128xf32> to vector<2x128xf32>
    %3 = arith.mulf %0, %2 : vector<2x128xf32>
    %c0_3 = arith.constant 0 : index
    %c0_4 = arith.constant 0 : index
    %4 = vector.load %arg3[%c0_3, %c0_4] : memref<2x128xf32, #tpu.memory_space<vmem>>, vector<2x128xf32>
    tpu.vector_store %arg3[%c0_3, %c0_4], %3 {strides = array<i32>} : memref<2x128xf32, #tpu.memory_space<vmem>>, vector<2x128xf32>,
    return
  }
  func.func @transform_0(%arg0: i32) -> (i32, i32) {
    %c0_i32 = arith.constant 0 : i32
    %c0_i32_0 = arith.constant 0 : i32
    %c0_i32_1 = arith.constant 0 : i32
    return %c0_i32, %c0_i32_0 : i32, i32
  }
  func.func @transform_1(%arg0: i32) -> (i32, i32) {
    %c0_i32 = arith.constant 0 : i32
    %c0_i32_0 = arith.constant 0 : i32
    return %arg0, %c0_i32 : i32, i32
  }
  func.func @transform_2(%arg0: i32) -> (i32, i32) {
    %c0_i32 = arith.constant 0 : i32
    %c0_i32_0 = arith.constant 0 : i32
    return %arg0, %c0_i32 : i32, i32
  }
}

</mosaic_0001>

<llo_original>
// kernel: tpu_custom_call.1
$region0: #{tpu_custom_call.1}
  #allocation0 [shape = 'u32[]', space=smem, size = 0x4, offset = 0x4, fixed_abs, tag = 'smem constant byte address 0x4 - core index']
  #allocation1 [shape = 'u32[144,128]{1,0:T(1,128)}', space=vmem, size = 0x12000, scoped, tag = 'internal scratch']
  %s0 = inlined_call_operand.hbm [shape: f32[1,128], index: 0, kind: input, shape index: {}]
  %s1 = inlined_call_operand.hbm [shape: f32[2,128], index: 1, kind: input, shape index: {}]
  %s2 = inlined_call_operand.hbm [shape: f32[2,128], index: 2, kind: output, shape index: {}]
  %s3 = sld [smem:[#allocation0]]
  $region26: #{tpu_custom_call.1} parent=0
    _
  %s5 = ssub.s32 1, %s3
  %s6 = scalar_select 0, %s5, %s3
  $region1: #{tpu_custom_call.1} parent=0
    #allocation2 [shape = 'u8[512]{0}', space=vmem, size = 0x400, scoped, tag = 'input window, operand 0, single buffered']
    #allocation3 [shape = 's32[1]{0}', space=sflag, size = 0x4, scoped, tag = 'scoped memory for tpu_custom_call.1']
    #allocation4 [shape = 's32[1]{0}', space=sflag, size = 0x4, scoped, tag = 'scoped memory for tpu_custom_call.1']
    #allocation5 [shape = 'u8[1024]{0}', space=vmem, size = 0x400, scoped, tag = 'input window, operand 1, single buffered']
    #allocation6 [shape = 's32[1]{0}', space=sflag, size = 0x4, scoped, tag = 'scoped memory for tpu_custom_call.1']
    #allocation7 [shape = 'u8[1024]{0}', space=vmem, size = 0x400, scoped, tag = 'output window, operand 0, single buffered']
    %7 = vsyncpa [#allocation3], 0
    %8 = vsyncpa [#allocation6], 0
    %9 = vsyncpa [#allocation4], 0
    // Predicated region
    $region2: #{tpu_custom_call.1} parent=1 // pred_check
      _
    $region3: #{tpu_custom_call.1} parent=1 // pred_check_branch
      %11 = sbr.rel (0) target = $region5
    $region4: #{tpu_custom_call.1} parent=1 // pred_region
      %s13 = ssub.s32 16, 16
      %14 = vsyncadd [#allocation3], %s13
      %s16 = sshll.u32 [#allocation2], 4
      %s17 = int_to_ptr.vmem [resolvable:$true] %s16
      %19 = dma.hbm_to_vmem [thread:$0]  %s0, 16, %s17, [#allocation3]
    $region5: #{tpu_custom_call.1} parent=1 // pred_fallthru
      _
    // Predicated region
    $region6: #{tpu_custom_call.1} parent=1 // pred_check
      _
    $region7: #{tpu_custom_call.1} parent=1 // pred_check_branch
      %21 = sbr.rel (0) target = $region9
    $region8: #{tpu_custom_call.1} parent=1 // pred_region
      %s23 = ssub.s32 32, 32
      %24 = vsyncadd [#allocation6], %s23
      %s26 = sshll.u32 [#allocation5], 4
      %s27 = int_to_ptr.vmem [resolvable:$true] %s26
      %29 = dma.hbm_to_vmem [thread:$0]  %s1, 32, %s27, [#allocation6]
    $region9: #{tpu_custom_call.1} parent=1 // pred_fallthru
      _
    // Predicated region
    $region10: #{tpu_custom_call.1} parent=1 // pred_check
      _
    $region11: #{tpu_custom_call.1} parent=1 // pred_check_branch
      %31 = sbr.rel (0) target = $region13
    $region12: #{tpu_custom_call.1} parent=1 // pred_region
      %32 = dma.done [#allocation3], 16
    $region13: #{tpu_custom_call.1} parent=1 // pred_fallthru
      _
    // Predicated region
    $region14: #{tpu_custom_call.1} parent=1 // pred_check
      _
    $region15: #{tpu_custom_call.1} parent=1 // pred_check_branch
      %34 = sbr.rel (0) target = $region17
    $region16: #{tpu_custom_call.1} parent=1 // pred_region
      %35 = dma.done [#allocation6], 32
    $region17: #{tpu_custom_call.1} parent=1 // pred_fallthru
      _
    %v36 = vld [vmem:[#allocation5] sm:$0x3]
    %v37 = vld [vmem:[#allocation2] sm:$0x1]
    %v39 = vlaneseq
    %v40 = vshrl.u32 %v39, 7
    %v41 = vsub.s32 0, %v40
    %v42 = vrot.slane %v37, %v41
    %v44 = vmul.f32 %v36, %v42
    %45 = vst [vmem:[#allocation7] sm:$0x3] %v44
    // Predicated region
    $region18: #{tpu_custom_call.1} parent=1 // pred_check
      _
    $region19: #{tpu_custom_call.1} parent=1 // pred_check_branch
      %47 = sbr.rel (0) target = $region21
    $region20: #{tpu_custom_call.1} parent=1 // pred_region
      %s49 = ssub.s32 32, 32
      %50 = vsyncadd [#allocation4], %s49
      %s52 = sshll.u32 [#allocation7], 4
      %s53 = int_to_ptr.vmem [resolvable:$true] %s52
      %55 = dma.vmem_to_hbm [thread:$0]  %s53, 32, %s2, [#allocation4]
    $region21: #{tpu_custom_call.1} parent=1 // pred_fallthru
      _
    // Predicated region
    $region22: #{tpu_custom_call.1} parent=1 // pred_check
      _
    $region23: #{tpu_custom_call.1} parent=1 // pred_check_branch
      %57 = sbr.rel (0) target = $region25
    $region24: #{tpu_custom_call.1} parent=1 // pred_region
      %58 = dma.done [#allocation4], 32
    $region25: #{tpu_custom_call.1} parent=1 // pred_fallthru
      _
    %59 = vsyncpa [#allocation3], 1
    %60 = vsyncpa [#allocation6], 1
    %61 = vsyncpa [#allocation4], 1

</llo_original>
